<compile_context>
chip_gen: v6e
topology: v6e:2x2x1
jax: 0.10.0
libtpu: 0.0.40
codegen_flags: <defaults>
</compile_context>

<pallas_src>
import functools

import jax
import jax.numpy as jnp
from jax.experimental import pallas as pl
from jax.experimental.pallas import tpu as pltpu


def _pick_time_tile(l_out: int) -> int:
    """Largest multiple-of-8 tile that evenly divides L_out (else whole axis)."""
    for t in (512, 256, 128, 64, 32, 16, 8):
        if l_out % t == 0:
            return t
    return l_out


def _conv_bn_act_kernel(x_ref, w_ref, scale_ref, shift_ref, out_ref,
                        *, n_taps, stride, dilation, tile_t, activation):
    """One (batch b, time-tile t) grid cell.

    x_ref:     (L_pad, C_in)   padded, channels-last input for batch b (VMEM)
    w_ref:     (K, C_in, C_out) conv weights, tap-major            (VMEM)
    scale_ref: (1, C_out)      fused BN scale  = gamma / sqrt(var+eps)
    shift_ref: (1, C_out)      fused BN shift  = beta + (bias - mean) * scale
    out_ref:   (tile_t, C_out) output tile
    """
    t = pl.program_id(1)
    c_out = out_ref.shape[-1]

    base = pl.multiple_of(t * (tile_t * stride), tile_t * stride)

    acc = jnp.zeros((tile_t, c_out), dtype=jnp.float32)
    for k in range(n_taps):  # K is a small static int -> unrolled at trace time
        start = base + k * dilation
        if stride == 1:
            x_k = x_ref[pl.ds(start, tile_t), :]                 # (tile_t, C_in)
        else:
            x_k = x_ref[pl.ds(start, tile_t, stride), :]         # strided gather
        acc += jnp.dot(x_k, w_ref[k], preferred_element_type=jnp.float32)

    y = acc * scale_ref[...] + shift_ref[...]                    # fused BN affine
    if activation == "relu":
        y = jnp.maximum(y, 0.0)
    elif activation == "tanh":
        y = jnp.tanh(y)
    # 'linear' -> identity; Dropout is identity at inference.
    out_ref[...] = y.astype(out_ref.dtype)


def conv1d_batchnorm_forward(x, weight, conv_bias, gamma, beta,
                             running_mean, running_var, *,
                             stride=1, padding=0, dilation=1,
                             eps=1e-5, activation="linear"):
    """Pallas implementation of Conv1dBatchNorm.forward (inference).

    x:      (B, C_in, L_in)  float32   (PyTorch Conv1d layout)
    weight: (C_out, C_in, K) float32
    returns (B, C_out, L_out) float32  — same layout as the PyTorch module.
    """
    B, C_in, L_in = x.shape
    C_out, C_in_w, K = weight.shape
    assert C_in_w == C_in
    L_out = (L_in + 2 * padding - dilation * (K - 1) - 1) // stride + 1
    assert L_out > 0

    # ---- layout plumbing (channels-last = lane dim) + zero padding ----------
    x_t = jnp.transpose(x, (0, 2, 1)).astype(jnp.float32)        # (B, L_in, C_in)
    if padding > 0:
        x_t = jnp.pad(x_t, ((0, 0), (padding, padding), (0, 0)))
    L_pad = L_in + 2 * padding

    w_t = jnp.transpose(weight, (2, 1, 0)).astype(jnp.float32)   # (K, C_in, C_out)

    # ---- fold conv bias + BatchNorm(eval) into a per-channel scale/shift ----
    inv_std = jax.lax.rsqrt(running_var.astype(jnp.float32) + eps)
    scale = gamma.astype(jnp.float32) * inv_std                  # (C_out,)
    bias_vec = (conv_bias.astype(jnp.float32) if conv_bias is not None
                else jnp.zeros((C_out,), jnp.float32))
    shift = beta.astype(jnp.float32) + (bias_vec - running_mean.astype(jnp.float32)) * scale
    scale_2d = scale[None, :]                                    # (1, C_out)
    shift_2d = shift[None, :]                                    # (1, C_out)

    tile_t = _pick_time_tile(L_out)
    grid = (B, L_out // tile_t)

    kernel = functools.partial(
        _conv_bn_act_kernel,
        n_taps=K, stride=stride, dilation=dilation,
        tile_t=tile_t, activation=activation,
    )

    out_blc = pl.pallas_call(
        kernel,
        out_shape=jax.ShapeDtypeStruct((B, L_out, C_out), jnp.float32),
        grid=grid,
        in_specs=[
            # full padded sequence for batch b; block index constant along t,
            # so it stays VMEM-resident across the time tiles.
            pl.BlockSpec((None, L_pad, C_in), lambda b, t: (b, 0, 0)),
            pl.BlockSpec((K, C_in, C_out), lambda b, t: (0, 0, 0)),
            pl.BlockSpec((1, C_out), lambda b, t: (0, 0)),
            pl.BlockSpec((1, C_out), lambda b, t: (0, 0)),
        ],
        out_specs=pl.BlockSpec((None, tile_t, C_out), lambda b, t: (b, t, 0)),
        compiler_params=pltpu.CompilerParams(
            dimension_semantics=("parallel", "arbitrary")),
    )(x_t, w_t, scale_2d, shift_2d)

    return jnp.transpose(out_blc, (0, 2, 1))                     # (B, C_out, L_out)


if __name__ == "__main__":
    # Small deterministic example consistent with the module.
    B, C_in, C_out, L = 2, 32, 32, 16
    K, stride, padding, dilation = 3, 1, 1, 1
    eps = 1e-5
    activation = "relu"

    key = jax.random.PRNGKey(0)
    k_x, k_w, k_b, k_g, k_be, k_m, k_v = jax.random.split(key, 7)

    x = jax.random.normal(k_x, (B, C_in, L), dtype=jnp.float32)
    bound = (6.0 / (C_in * K + C_out * K)) ** 0.5                # xavier-uniform-ish
    weight = jax.random.uniform(k_w, (C_out, C_in, K), jnp.float32, -bound, bound)
    conv_bias = 0.1 * jax.random.normal(k_b, (C_out,), jnp.float32)
    gamma = 1.0 + 0.1 * jax.random.normal(k_g, (C_out,), jnp.float32)
    beta = 0.1 * jax.random.normal(k_be, (C_out,), jnp.float32)
    running_mean = 0.1 * jax.random.normal(k_m, (C_out,), jnp.float32)
    running_var = jnp.abs(jax.random.normal(k_v, (C_out,), jnp.float32)) + 0.5

    out = conv1d_batchnorm_forward(
        x, weight, conv_bias, gamma, beta, running_mean, running_var,
        stride=stride, padding=padding, dilation=dilation, eps=eps,
        activation=activation)
    out = jax.block_until_ready(out)

    # Pure-JAX reference (same eval-mode math as the PyTorch module).
    conv_ref = jax.lax.conv_general_dilated(
        x, weight, window_strides=(stride,), padding=[(padding, padding)],
        rhs_dilation=(dilation,), dimension_numbers=("NCH", "OIH", "NCH"),
        precision=jax.lax.Precision.HIGHEST)
    conv_ref = conv_ref + conv_bias[None, :, None]
    inv_std = 1.0 / jnp.sqrt(running_var + eps)
    bn_ref = ((conv_ref - running_mean[None, :, None])
              * (gamma * inv_std)[None, :, None] + beta[None, :, None])
    ref = jnp.maximum(bn_ref, 0.0)

    L_out = (L + 2 * padding - dilation * (K - 1) - 1) // stride + 1
    assert out.shape == (B, C_out, L_out), out.shape
    assert out.dtype == jnp.float32
    assert jnp.allclose(out, ref, atol=2e-2, rtol=2e-2), \
        float(jnp.max(jnp.abs(out - ref)))

    print("KERNEL_OK")
</pallas_src>

<mosaic_0001>
module attributes {stable_mosaic.version = 11 : i64} {
  func.func @_conv_bn_act_kernel(%arg0: i32, %arg1: i32, %arg2: memref<1x18x32xf32, #tpu.memory_space<vmem>>, %arg3: memref<3x32x32xf32, #tpu.memory_space<vmem>>, %arg4: memref<1x32xf32, #tpu.memory_space<vmem>>, %arg5: memref<1x32xf32, #tpu.memory_space<vmem>>, %arg6: memref<1x16x32xf32, #tpu.memory_space<vmem>>) attributes {dimension_semantics = [#tpu.dimension_semantics<parallel>, #tpu.dimension_semantics<arbitrary>], iteration_bounds = array<i64: 2, 1>, scalar_prefetch = 0 : i64, scratch_operands = 0 : i64, tpu.core_type = #tpu.core_type<tc>, window_params = [{transform_indices = @transform_0, window_bounds = array<i64: 1, 18, 32>}, {pipeline_mode = #tpu.pipeline_mode<synchronous>, transform_indices = @transform_1, window_bounds = array<i64: 3, 32, 32>}, {pipeline_mode = #tpu.pipeline_mode<synchronous>, transform_indices = @transform_2, window_bounds = array<i64: 1, 32>}, {pipeline_mode = #tpu.pipeline_mode<synchronous>, transform_indices = @transform_3, window_bounds = array<i64: 1, 32>}, {transform_indices = @transform_4, window_bounds = array<i64: 1, 16, 32>}]} {
    %c16_i32 = arith.constant 16 : i32
    %0 = arith.muli %arg1, %c16_i32 : i32
    %1 = tpu.assume_multiple %0, 16 : i32
    %cst = arith.constant 0.000000e+00 : f32
    %2 = vector.broadcast %cst : f32 to vector<16x32xf32>
    %c0_i32 = arith.constant 0 : i32
    %3 = arith.addi %1, %c0_i32 : i32
    %c0 = arith.constant 0 : index
    %4 = arith.index_cast %3 : i32 to index
    %c0_0 = arith.constant 0 : index
    %5 = vector.load %arg2[%c0, %4, %c0_0] : memref<1x18x32xf32, #tpu.memory_space<vmem>>, vector<1x16x32xf32>
    %6 = vector.shape_cast %5 : vector<1x16x32xf32> to vector<16x32xf32>
    %c0_1 = arith.constant 0 : index
    %c0_2 = arith.constant 0 : index
    %c0_3 = arith.constant 0 : index
    %7 = vector.load %arg3[%c0_1, %c0_2, %c0_3] : memref<3x32x32xf32, #tpu.memory_space<vmem>>, vector<1x32x32xf32>
    %8 = vector.shape_cast %7 : vector<1x32x32xf32> to vector<32x32xf32>
    %cst_4 = arith.constant dense<0.000000e+00> : vector<16x32xf32>
    %9 = tpu.matmul %6, %8, %cst_4 {dimension_numbers = #tpu.dot_dimension_numbers<[1], [0], [0], [1], [0, 0, 1, 1], [], []>} : vector<16x32xf32>, vector<32x32xf32>, vector<16x32xf32> -> vector<16x32xf32>
    %10 = arith.addf %2, %9 : vector<16x32xf32>
    %c1_i32 = arith.constant 1 : i32
    %11 = arith.addi %1, %c1_i32 : i32
    %c0_5 = arith.constant 0 : index
    %12 = arith.index_cast %11 : i32 to index
    %c0_6 = arith.constant 0 : index
    %13 = vector.load %arg2[%c0_5, %12, %c0_6] : memref<1x18x32xf32, #tpu.memory_space<vmem>>, vector<1x16x32xf32>
    %14 = vector.shape_cast %13 : vector<1x16x32xf32> to vector<16x32xf32>
    %c1 = arith.constant 1 : index
    %c0_7 = arith.constant 0 : index
    %c0_8 = arith.constant 0 : index
    %15 = vector.load %arg3[%c1, %c0_7, %c0_8] : memref<3x32x32xf32, #tpu.memory_space<vmem>>, vector<1x32x32xf32>
    %16 = vector.shape_cast %15 : vector<1x32x32xf32> to vector<32x32xf32>
    %cst_9 = arith.constant dense<0.000000e+00> : vector<16x32xf32>
    %17 = tpu.matmul %14, %16, %cst_9 {dimension_numbers = #tpu.dot_dimension_numbers<[1], [0], [0], [1], [0, 0, 1, 1], [], []>} : vector<16x32xf32>, vector<32x32xf32>, vector<16x32xf32> -> vector<16x32xf32>
    %18 = arith.addf %10, %17 : vector<16x32xf32>
    %c2_i32 = arith.constant 2 : i32
    %19 = arith.addi %1, %c2_i32 : i32
    %c0_10 = arith.constant 0 : index
    %20 = arith.index_cast %19 : i32 to index
    %c0_11 = arith.constant 0 : index
    %21 = vector.load %arg2[%c0_10, %20, %c0_11] : memref<1x18x32xf32, #tpu.memory_space<vmem>>, vector<1x16x32xf32>
    %22 = vector.shape_cast %21 : vector<1x16x32xf32> to vector<16x32xf32>
    %c2 = arith.constant 2 : index
    %c0_12 = arith.constant 0 : index
    %c0_13 = arith.constant 0 : index
    %23 = vector.load %arg3[%c2, %c0_12, %c0_13] : memref<3x32x32xf32, #tpu.memory_space<vmem>>, vector<1x32x32xf32>
    %24 = vector.shape_cast %23 : vector<1x32x32xf32> to vector<32x32xf32>
    %cst_14 = arith.constant dense<0.000000e+00> : vector<16x32xf32>
    %25 = tpu.matmul %22, %24, %cst_14 {dimension_numbers = #tpu.dot_dimension_numbers<[1], [0], [0], [1], [0, 0, 1, 1], [], []>} : vector<16x32xf32>, vector<32x32xf32>, vector<16x32xf32> -> vector<16x32xf32>
    %26 = arith.addf %18, %25 : vector<16x32xf32>
    %c0_15 = arith.constant 0 : index
    %c0_16 = arith.constant 0 : index
    %27 = vector.load %arg4[%c0_15, %c0_16] : memref<1x32xf32, #tpu.memory_space<vmem>>, vector<1x32xf32>
    %28 = vector.broadcast %27 : vector<1x32xf32> to vector<16x32xf32>
    %29 = arith.mulf %26, %28 : vector<16x32xf32>
    %c0_17 = arith.constant 0 : index
    %c0_18 = arith.constant 0 : index
    %30 = vector.load %arg5[%c0_17, %c0_18] : memref<1x32xf32, #tpu.memory_space<vmem>>, vector<1x32xf32>
    %31 = vector.broadcast %30 : vector<1x32xf32> to vector<16x32xf32>
    %32 = arith.addf %29, %31 : vector<16x32xf32>
    %cst_19 = arith.constant 0.000000e+00 : f32
    %33 = vector.broadcast %cst_19 : f32 to vector<16x32xf32>
    %34 = arith.maximumf %32, %33 : vector<16x32xf32>
    %c0_20 = arith.constant 0 : index
    %c0_21 = arith.constant 0 : index
    %c0_22 = arith.constant 0 : index
    %35 = vector.load %arg6[%c0_20, %c0_21, %c0_22] : memref<1x16x32xf32, #tpu.memory_space<vmem>>, vector<1x16x32xf32>
    %36 = vector.shape_cast %35 : vector<1x16x32xf32> to vector<16x32xf32>
    %37 = vector.shape_cast %34 : vector<16x32xf32> to vector<1x16x32xf32>
    tpu.vector_store %arg6[%c0_20, %c0_21, %c0_22], %37 {strides = array<i32>} : memref<1x16x32xf32, #tpu.memory_space<vmem>>, vector<1x16x32xf32>,
    return
  }
  func.func @transform_0(%arg0: i32, %arg1: i32) -> (i32, i32, i32) {
    %c0_i32 = arith.constant 0 : i32
    %c0_i32_0 = arith.constant 0 : i32
    %c0_i32_1 = arith.constant 0 : i32
    return %arg0, %c0_i32, %c0_i32_0 : i32, i32, i32
  }
  func.func @transform_1(%arg0: i32, %arg1: i32) -> (i32, i32, i32) {
    %c0_i32 = arith.constant 0 : i32
    %c0_i32_0 = arith.constant 0 : i32
    %c0_i32_1 = arith.constant 0 : i32
    %c0_i32_2 = arith.constant 0 : i32
    return %c0_i32, %c0_i32_0, %c0_i32_1 : i32, i32, i32
  }
  func.func @transform_2(%arg0: i32, %arg1: i32) -> (i32, i32) {
    %c0_i32 = arith.constant 0 : i32
    %c0_i32_0 = arith.constant 0 : i32
    %c0_i32_1 = arith.constant 0 : i32
    return %c0_i32, %c0_i32_0 : i32, i32
  }
  func.func @transform_3(%arg0: i32, %arg1: i32) -> (i32, i32) {
    %c0_i32 = arith.constant 0 : i32
    %c0_i32_0 = arith.constant 0 : i32
    %c0_i32_1 = arith.constant 0 : i32
    return %c0_i32, %c0_i32_0 : i32, i32
  }
  func.func @transform_4(%arg0: i32, %arg1: i32) -> (i32, i32, i32) {
    %c0_i32 = arith.constant 0 : i32
    %c0_i32_0 = arith.constant 0 : i32
    return %arg0, %arg1, %c0_i32 : i32, i32, i32
  }
}

</mosaic_0001>

<llo_original>
// kernel: tpu_custom_call.1
$region0: #{tpu_custom_call.1}
  #allocation0 [shape = 'u32[]', space=smem, size = 0x4, offset = 0x4, fixed_abs, tag = 'smem constant byte address 0x4 - core index']
  #allocation1 [shape = 'u32[144,128]{1,0:T(1,128)}', space=vmem, size = 0x12000, scoped, tag = 'internal scratch']
  %s0 = inlined_call_operand.vmem [shape: f32[2,18,32], index: 0, kind: input, shape index: {}]
  %s1 = inlined_call_operand.hbm [shape: f32[3,32,32], index: 1, kind: input, shape index: {}]
  %s2 = inlined_call_operand.vmem [shape: f32[1,32], index: 2, kind: input, shape index: {}]
  %s3 = inlined_call_operand.vmem [shape: f32[1,32], index: 3, kind: input, shape index: {}]
  %s4 = inlined_call_operand.hbm [shape: f32[2,16,32], index: 4, kind: output, shape index: {}]
  %s5 = sld [smem:[#allocation0]]
  $region53: #{tpu_custom_call.1} parent=0
    _
  %s7 = ssub.s32 1, %s5
  %s8 = scalar_select 0, %s7, %s5
  $region1: #{tpu_custom_call.1} parent=0
    #allocation2 [shape = 'u8[49152]{0}', space=vmem, size = 0xc000, scoped, tag = 'input window, operand 1, single buffered']
    #allocation3 [shape = 's32[2]{0}', space=sflag, size = 0x8, scoped, tag = 'scoped memory for tpu_custom_call.1']
    #allocation4 [shape = 's32[2]{0}', space=sflag, size = 0x8, scoped, tag = 'scoped memory for tpu_custom_call.1']
    #allocation5 [shape = 'u8[16384]{0}', space=vmem, size = 0x4000, scoped, tag = 'output window, operand 0']
    %9 = vsyncpa [#allocation3], 0
    %10 = vsyncpa [#allocation4], 0
    %s11 = scalar_lea.sflag [#allocation4], 1
    %12 = vsyncpa %s11, 0
    loop: start=0, step=1, limit=4
    $region2: #{tpu_custom_call.1} parent=1 // loop_pre_header
      _
    $region3: #{tpu_custom_call.1} parent=1 // loop_header
      %s14 = sphi 0, %s18
      %p15 = scmp.ge.s32.totalorder %s14, 4
      %s21 = sphi 0, %s33
      %s22 = sphi 0, %s29
      %s23 = sphi 0, %s21
      %s24 = sphi 0, %s22
      %s25 = sphi 0, %s23
      %s26 = sphi 0, %s24
      %s36 = sphi 0, %s38
      %s39 = sphi 0, %s36
      %s40 = sphi 0, %s39
      %s56 = sphi 0, %s40
      %s60 = sphi 0, %s60
      %s62 = sphi 0, %s60
      %s63 = sphi 0, %s62
      %s77 = sphi 0, %s63
      %s81 = sphi 0, %s81
      %s83 = sphi 0, %s81
      %s84 = sphi 0, %s83
      %s98 = sphi 0, %s84
      %s102 = sphi 0, %s102
      %s104 = sphi 0, %s102
      %s105 = sphi 0, %s104
      %s119 = sphi 0, %s105
      %s127 = sphi 0, %s129
      %s130 = sphi 0, %s127
      %s131 = sphi 0, %s130
      %s147 = sphi 0, %s131
    $region4: #{tpu_custom_call.1} parent=1 // loop_header_branch
      %17 = sbr.rel (%p15) target = $region8
    $region5: #{tpu_custom_call.1} parent=1 // loop_body
      %s19 = ssub.s32 %s14, 1
      %s20 = ssub.s32 %s14, 2
      %s27 = sadd.s32 1, %s22
      %p28 = scmp.ge.s32.totalorder %s27, 1
      %s29 = scalar_select %p28, 0, %s27
      %s30 = sadd.s32 1, %s21
      %s31 = scalar_select %p28, %s30, %s21
      %p32 = scmp.ge.s32.totalorder %s31, 2
      %s33 = scalar_select %p32, 0, %s31
      %s34 = ssub.s32 %s21, %s33
      %p35 = scmp.eq.s32.totalorder %s34, 0
      %s37 = sadd.s32 %s36, 1
      %s38 = scalar_select %p35, %s36, %s37
      %p41 = pneg %p35
      %p42 = scmp.eq.s32.totalorder %s14, 1
      %p43 = por %p41, %p42
      %p44 = scmp.ne.s32.totalorder %s36, %s39
      %p45 = scmp.eq.s32.totalorder %s14, 0
      %p46 = por %p44, %p45
      %p47 = scmp.ne.s32.totalorder %s36, %s39
      %p48 = scmp.eq.s32.totalorder %s19, 1
      %p49 = por %p47, %p48
      %p50 = scmp.ne.s32.totalorder %s39, %s40
      %p51 = scmp.eq.s32.totalorder %s19, 0
      %p52 = por %p50, %p51
      %p53 = scmp.ne.s32.totalorder %s39, %s40
      %p54 = scmp.eq.s32.totalorder %s20, 1
      %p55 = por %p53, %p54
      %p57 = scmp.ne.s32.totalorder %s40, %s56
      %p58 = scmp.eq.s32.totalorder %s20, 0
      %p59 = por %p57, %p58
      %s61 = sadd.s32 %s60, 1
      %p64 = scmp.eq.s32.totalorder %s14, 1
      %p65 = scmp.ne.s32.totalorder %s60, %s62
      %p66 = scmp.eq.s32.totalorder %s14, 0
      %p67 = por %p65, %p66
      %p68 = scmp.ne.s32.totalorder %s60, %s62
      %p69 = scmp.eq.s32.totalorder %s19, 1
      %p70 = por %p68, %p69
      %p71 = scmp.ne.s32.totalorder %s62, %s63
      %p72 = scmp.eq.s32.totalorder %s19, 0
      %p73 = por %p71, %p72
      %p74 = scmp.ne.s32.totalorder %s62, %s63
      %p75 = scmp.eq.s32.totalorder %s20, 1
      %p76 = por %p74, %p75
      %p78 = scmp.ne.s32.totalorder %s63, %s77
      %p79 = scmp.eq.s32.totalorder %s20, 0
      %p80 = por %p78, %p79
      %s82 = sadd.s32 %s81, 1
      %p85 = scmp.eq.s32.totalorder %s14, 1
      %p86 = scmp.ne.s32.totalorder %s81, %s83
      %p87 = scmp.eq.s32.totalorder %s14, 0
      %p88 = por %p86, %p87
      %p89 = scmp.ne.s32.totalorder %s81, %s83
      %p90 = scmp.eq.s32.totalorder %s19, 1
      %p91 = por %p89, %p90
      %p92 = scmp.ne.s32.totalorder %s83, %s84
      %p93 = scmp.eq.s32.totalorder %s19, 0
      %p94 = por %p92, %p93
      %p95 = scmp.ne.s32.totalorder %s83, %s84
      %p96 = scmp.eq.s32.totalorder %s20, 1
      %p97 = por %p95, %p96
      %p99 = scmp.ne.s32.totalorder %s84, %s98
      %p100 = scmp.eq.s32.totalorder %s20, 0
      %p101 = por %p99, %p100
      %s103 = sadd.s32 %s102, 1
      %p106 = scmp.eq.s32.totalorder %s14, 1
      %p107 = scmp.ne.s32.totalorder %s102, %s104
      %p108 = scmp.eq.s32.totalorder %s14, 0
      %p109 = por %p107, %p108
      %p110 = scmp.ne.s32.totalorder %s102, %s104
      %p111 = scmp.eq.s32.totalorder %s19, 1
      %p112 = por %p110, %p111
      %p113 = scmp.ne.s32.totalorder %s104, %s105
      %p114 = scmp.eq.s32.totalorder %s19, 0
      %p115 = por %p113, %p114
      %p116 = scmp.ne.s32.totalorder %s104, %s105
      %p117 = scmp.eq.s32.totalorder %s20, 1
      %p118 = por %p116, %p117
      %p120 = scmp.ne.s32.totalorder %s105, %s119
      %p121 = scmp.eq.s32.totalorder %s20, 0
      %p122 = por %p120, %p121
      %s123 = ssub.s32 %s21, %s33
      %s124 = ssub.s32 %s22, %s29
      %s125 = sor.u32 %s123, %s124
      %p126 = scmp.eq.s32.totalorder %s125, 0
      %s128 = sadd.s32 %s127, 1
      %s129 = scalar_select %p126, %s127, %s128
      %p132 = pneg %p126
      %p133 = scmp.eq.s32.totalorder %s14, 1
      %p134 = por %p132, %p133
      %p135 = scmp.ne.s32.totalorder %s127, %s130
      %p136 = scmp.eq.s32.totalorder %s14, 0
      %p137 = por %p135, %p136
      %p138 = scmp.ne.s32.totalorder %s127, %s130
      %p139 = scmp.eq.s32.totalorder %s19, 1
      %p140 = por %p138, %p139
      %p141 = scmp.ne.s32.totalorder %s130, %s131
      %p142 = scmp.eq.s32.totalorder %s19, 0
      %p143 = por %p141, %p142
      %p144 = scmp.ne.s32.totalorder %s130, %s131
      %p145 = scmp.eq.s32.totalorder %s20, 1
      %p146 = por %p144, %p145
      %p148 = scmp.ne.s32.totalorder %s131, %s147
      %p149 = scmp.eq.s32.totalorder %s20, 0
      %p150 = por %p148, %p149
      %p151 = scmp.le.s32.totalorder 1, %s14
      %p152 = scmp.lt.s32.totalorder %s14, 3
      %p153 = pnand %p151, %p152
      %p154 = pneg %p153
      // Predicated region
      $region9: #{tpu_custom_call.1} parent=5 // pred_check
        _
      $region10: #{tpu_custom_call.1} parent=5 // pred_check_branch
        %156 = sbr.rel (%p153) target = $region12
      $region11: #{tpu_custom_call.1} parent=5 // pred_region
        %s157 = ssub.s32 %s14, 1
        // Predicated region
        $region13: #{tpu_custom_call.1} parent=11 // pred_check
          %p158 = pneg %p73
        $region14: #{tpu_custom_call.1} parent=11 // pred_check_branch
          %160 = sbr.rel (%p158) target = $region16
        $region15: #{tpu_custom_call.1} parent=11 // pred_region
          %s162 = ssub.s32 1536, 1536
          %163 = vsyncadd [#allocation3], %s162
          %s164 = sshll.u32 [#allocation2], 4
          %s165 = int_to_ptr.vmem [resolvable:$true] %s164
          %170 = dma.hbm_to_vmem [thread:$0]  %s1, 1536, %s165, [#allocation3], 128, 128, 8
        $region16: #{tpu_custom_call.1} parent=11 // pred_fallthru
          _
        // Predicated region
        $region17: #{tpu_custom_call.1} parent=11 // pred_check
          %p171 = pneg %p94
        $region18: #{tpu_custom_call.1} parent=11 // pred_check_branch
          %173 = sbr.rel (%p171) target = $region20
        $region19: #{tpu_custom_call.1} parent=11 // pred_region
          _
        $region20: #{tpu_custom_call.1} parent=11 // pred_fallthru
          _
        // Predicated region
        $region21: #{tpu_custom_call.1} parent=11 // pred_check
          %p174 = pneg %p115
        $region22: #{tpu_custom_call.1} parent=11 // pred_check_branch
          %176 = sbr.rel (%p174) target = $region24
        $region23: #{tpu_custom_call.1} parent=11 // pred_region
          _
        $region24: #{tpu_custom_call.1} parent=11 // pred_fallthru
          _
      $region12: #{tpu_custom_call.1} parent=5 // pred_fallthru
        _
      %p177 = scmp.lt.s32.totalorder %s14, 2
      // Predicated region
      $region25: #{tpu_custom_call.1} parent=5 // pred_check
        %p178 = pneg %p177
      $region26: #{tpu_custom_call.1} parent=5 // pred_check_branch
        %180 = sbr.rel (%p178) target = $region28
      $region27: #{tpu_custom_call.1} parent=5 // pred_region
        // Predicated region
        $region29: #{tpu_custom_call.1} parent=27 // pred_check
          %p181 = pneg %p46
        $region30: #{tpu_custom_call.1} parent=27 // pred_check_branch
          %183 = sbr.rel (%p181) target = $region32
        $region31: #{tpu_custom_call.1} parent=27 // pred_region
          %p184 = scmp.lt.s32.totalorder %s21, 1
          %s185 = scalar_select %p184, %s21, 1
          %s186 = smul.addr %s185, 3
          %s187 = smul.addr %s186, 8
          %s188 = scalar_lea.vmem %s0, %s187
        $region32: #{tpu_custom_call.1} parent=27 // pred_fallthru
          _
      $region28: #{tpu_custom_call.1} parent=5 // pred_fallthru
        _
      %p189 = scmp.le.s32.totalorder 1, %s14
      %p190 = scmp.lt.s32.totalorder %s14, 3
      %p191 = pnand %p189, %p190
      %p192 = pneg %p191
      // Predicated region
      $region33: #{tpu_custom_call.1} parent=5 // pred_check
        _
      $region34: #{tpu_custom_call.1} parent=5 // pred_check_branch
        %194 = sbr.rel (%p191) target = $region36
      $region35: #{tpu_custom_call.1} parent=5 // pred_region
        %s195 = ssub.s32 %s14, 1
        // Predicated region
        $region37: #{tpu_custom_call.1} parent=35 // pred_check
          %p196 = pneg %p73
        $region38: #{tpu_custom_call.1} parent=35 // pred_check_branch
          %198 = sbr.rel (%p196) target = $region40
        $region39: #{tpu_custom_call.1} parent=35 // pred_region
          %199 = dma.done [#allocation3], 1536
        $region40: #{tpu_custom_call.1} parent=35 // pred_fallthru
          _
        %p200 = scmp.lt.s32.totalorder %s23, 1
        %s201 = scalar_select %p200, %s23, 1
        %s202 = smul.addr %s201, 3
        %s203 = smul.addr %s202, 8
        %s204 = scalar_lea.vmem %s0, %s203
        %p205 = pneg %p52
        %p206 = pneg %p49
        %p207 = pneg %p73
        %p208 = pneg %p70
        %p209 = pneg %p94
        %p210 = pneg %p91
        %p211 = pneg %p115
        %p212 = pneg %p112
        %p213 = pneg %p143
        %p214 = pneg %p140
        %s215 = sand.u32 %s130, 1
        %s216 = scalar_lea.sflag [#allocation4], %s215
        %s217 = sand.u32 %s130, 1
        %s218 = smul.addr %s217, 16
        %s219 = scalar_lea.vmem [#allocation5], %s218
        %p220 = scmp.lt.s32.totalorder %s23, 1
        %s221 = scalar_select %p220, %s23, 1
        %s222 = smul.addr %s221, 3
        %s223 = smul.addr %s222, 8
        %s224 = scalar_lea.vmem %s0, %s223
        %s225 = smul.u32 2, %s24
        %s226 = smul.u32 %s24, 16
        %s227 = scalar_lea.vmem %s224, %s226
        %v228 = vld [vmem:[%s227] sm:$0xff]
        %v229 = vld [vmem:[%s227 + $0x8] sm:$0xff]
        %v230 = vld [vmem:[#allocation2] sm:$0xff]
        %v231 = vld [vmem:[#allocation2 + $0x8] sm:$0xff]
        %v232 = vld [vmem:[#allocation2 + $0x10] sm:$0xff]
        %v233 = vld [vmem:[#allocation2 + $0x18] sm:$0xff]
        %s234 = sadd.s32 %s226, 1
        %s235 = scalar_lea.vmem %s224, %s234
        %v236 = vld [vmem:[%s235] sm:$0xff]
        %v237 = vld [vmem:[%s235 + $0x8] sm:$0xff]
        %s238 = scalar_lea.vmem [#allocation2], 32
        %v239 = vld [vmem:[%s238] sm:$0xff]
        %v240 = vld [vmem:[%s238 + $0x8] sm:$0xff]
        %v241 = vld [vmem:[%s238 + $0x10] sm:$0xff]
        %v242 = vld [vmem:[%s238 + $0x18] sm:$0xff]
        %vm243 = vcmask 261120
        %v245 = vsel %vm243, %v236, 0
        %v248 = vsel %vm243, %v237, 0
        %250 = vmatprep.subr.mxu0 0.0
        %251 = vmatpush1.msra.mxu0 0.0
        %252 = vmatprep.subr.mxu0 0.0
        %253 = vmatpush1.msra.mxu0 0.0
        %254 = vmatprep.subr.mxu0 0.0
        %255 = vmatpush1.msra.mxu0 0.0
        %256 = vmatprep.subr.mxu0 0.0
        %257 = vmatpush1.msra.mxu0 0.0
        %258 = vmatprep.subr.mxu0 0.0
        %259 = vmatpush1.msra.mxu0 0.0
        %260 = vmatprep.subr.mxu0 0.0
        %261 = vmatpush1.msra.mxu0 0.0
        %262 = vmatprep.subr.mxu0 0.0
        %263 = vmatpush1.msra.mxu0 0.0
        %264 = vmatprep.subr.mxu0 0.0
        %265 = vmatpush1.msra.mxu0 0.0
        %266 = vmatprep.subr.mxu0 0.0
        %267 = vmatpush1.msra.mxu0 0.0
        %268 = vmatprep.subr.mxu0 0.0
        %269 = vmatpush1.msra.mxu0 0.0
        %270 = vmatprep.subr.mxu0 0.0
        %271 = vmatpush1.msra.mxu0 0.0
        %272 = vmatprep.subr.mxu0 0.0
        %273 = vmatpush1.msra.mxu0 0.0
        %274 = vmatprep.subr.mxu0 0.0
        %275 = vmatpush1.msra.mxu0 %v242
        %276 = vmatprep.subr.mxu0 0.0
        %277 = vmatpush1.msra.mxu0 %v241
        %278 = vmatprep.subr.mxu0 0.0
        %279 = vmatpush1.msra.mxu0 %v240
        %280 = vmatprep.subr.mxu0 0.0
        %281 = vmatpush1.msra.mxu0 %v239
        %282 = vmatprep.subr.mxu0 0.0
        %283 = vmatpush2.msra.mxu0 0.0
        %284 = vmatprep.subr.mxu0 0.0
        %285 = vmatpush2.msra.mxu0 0.0
        %286 = vmatprep.subr.mxu0 0.0
        %287 = vmatpush2.msra.mxu0 0.0
        %288 = vmatprep.subr.mxu0 0.0
        %289 = vmatpush2.msra.mxu0 0.0
        %290 = vmatprep.subr.mxu0 0.0
        %291 = vmatpush2.msra.mxu0 0.0
        %292 = vmatprep.subr.mxu0 0.0
        %293 = vmatpush2.msra.mxu0 0.0
        %294 = vmatprep.subr.mxu0 0.0
        %295 = vmatpush2.msra.mxu0 0.0
        %296 = vmatprep.subr.mxu0 0.0
        %297 = vmatpush2.msra.mxu0 0.0
        %298 = vmatprep.subr.mxu0 0.0
        %299 = vmatpush2.msra.mxu0 0.0
        %300 = vmatprep.subr.mxu0 0.0
        %301 = vmatpush2.msra.mxu0 0.0
        %302 = vmatprep.subr.mxu0 0.0
        %303 = vmatpush2.msra.mxu0 0.0
        %304 = vmatprep.subr.mxu0 0.0
        %305 = vmatpush2.msra.mxu0 0.0
        %306 = vmatprep.subr.mxu0 0.0
        %307 = vmatpush2.msra.mxu0 0.0
        %308 = vmatprep.subr.mxu0 0.0
        %309 = vmatpush2.msra.mxu0 0.0
        %310 = vmatprep.subr.mxu0 0.0
        %311 = vmatpush2.msra.mxu0 0.0
        %312 = vmatprep.subr.mxu0 0.0
        %313 = vmatpush2.msra.mxu0 0.0
        %314 = vmatprep.mubr.f32.mxu0 0.0
        %315 = vmatmul.mubr.f32.gmra.mxu0 %v245
        %v316 = vpop.f32.mrf.mxu0
        %v317 = vadd.f32 0.0, %v316
        %v318 = vpop.f32.mrf.mxu0
        %319 = vmatprep.mubr.f32.mxu0 0.0
        %320 = vmatmul.mubr.f32.gmra.mxu0 %v248
        %v321 = vpop.f32.mrf.mxu0
        %v322 = vadd.f32 0.0, %v321
        %v323 = vpop.f32.mrf.mxu0
        %324 = vdwg.mxu0
        %v326 = vsel %vm243, %v228, 0
        %v329 = vsel %vm243, %v229, 0
        %331 = vmatprep.subr.mxu0 0.0
        %332 = vmatpush1.msra.mxu0 0.0
        %333 = vmatprep.subr.mxu0 0.0
        %334 = vmatpush1.msra.mxu0 0.0
        %335 = vmatprep.subr.mxu0 0.0
        %336 = vmatpush1.msra.mxu0 0.0
        %337 = vmatprep.subr.mxu0 0.0
        %338 = vmatpush1.msra.mxu0 0.0
        %339 = vmatprep.subr.mxu0 0.0
        %340 = vmatpush1.msra.mxu0 0.0
        %341 = vmatprep.subr.mxu0 0.0
        %342 = vmatpush1.msra.mxu0 0.0
        %343 = vmatprep.subr.mxu0 0.0
        %344 = vmatpush1.msra.mxu0 0.0
        %345 = vmatprep.subr.mxu0 0.0
        %346 = vmatpush1.msra.mxu0 0.0
        %347 = vmatprep.subr.mxu0 0.0
        %348 = vmatpush1.msra.mxu0 0.0
        %349 = vmatprep.subr.mxu0 0.0
        %350 = vmatpush1.msra.mxu0 0.0
        %351 = vmatprep.subr.mxu0 0.0
        %352 = vmatpush1.msra.mxu0 0.0
        %353 = vmatprep.subr.mxu0 0.0
        %354 = vmatpush1.msra.mxu0 0.0
        %355 = vmatprep.subr.mxu0 0.0
        %356 = vmatpush1.msra.mxu0 %v233
        %357 = vmatprep.subr.mxu0 0.0
        %358 = vmatpush1.msra.mxu0 %v232
        %359 = vmatprep.subr.mxu0 0.0
        %360 = vmatpush1.msra.mxu0 %v231
        %361 = vmatprep.subr.mxu0 0.0
        %362 = vmatpush1.msra.mxu0 %v230
        %363 = vmatprep.subr.mxu0 0.0
        %364 = vmatpush2.msra.mxu0 0.0
        %365 = vmatprep.subr.mxu0 0.0
        %366 = vmatpush2.msra.mxu0 0.0
        %367 = vmatprep.subr.mxu0 0.0
        %368 = vmatpush2.msra.mxu0 0.0
        %369 = vmatprep.subr.mxu0 0.0
        %370 = vmatpush2.msra.mxu0 0.0
        %371 = vmatprep.subr.mxu0 0.0
        %372 = vmatpush2.msra.mxu0 0.0
        %373 = vmatprep.subr.mxu0 0.0
        %374 = vmatpush2.msra.mxu0 0.0
        %375 = vmatprep.subr.mxu0 0.0
        %376 = vmatpush2.msra.mxu0 0.0
        %377 = vmatprep.subr.mxu0 0.0
        %378 = vmatpush2.msra.mxu0 0.0
        %379 = vmatprep.subr.mxu0 0.0
        %380 = vmatpush2.msra.mxu0 0.0
        %381 = vmatprep.subr.mxu0 0.0
        %382 = vmatpush2.msra.mxu0 0.0
        %383 = vmatprep.subr.mxu0 0.0
        %384 = vmatpush2.msra.mxu0 0.0
        %385 = vmatprep.subr.mxu0 0.0
        %386 = vmatpush2.msra.mxu0 0.0
        %387 = vmatprep.subr.mxu0 0.0
        %388 = vmatpush2.msra.mxu0 0.0
        %389 = vmatprep.subr.mxu0 0.0
        %390 = vmatpush2.msra.mxu0 0.0
        %391 = vmatprep.subr.mxu0 0.0
        %392 = vmatpush2.msra.mxu0 0.0
        %393 = vmatprep.subr.mxu0 0.0
        %394 = vmatpush2.msra.mxu0 0.0
        %395 = vmatprep.mubr.f32.mxu0 0.0
        %396 = vmatmul.mubr.f32.gmra.mxu0 %v326
        %v397 = vpop.f32.mrf.mxu0
        %v398 = vadd.f32 %v317, %v397
        %v399 = vpop.f32.mrf.mxu0
        %400 = vmatprep.mubr.f32.mxu0 0.0
        %401 = vmatmul.mubr.f32.gmra.mxu0 %v329
        %v402 = vpop.f32.mrf.mxu0
        %v403 = vadd.f32 %v322, %v402
        %v404 = vpop.f32.mrf.mxu0
        %405 = vdwg.mxu0
        %s406 = sadd.s32 %s226, 2
        %s407 = scalar_lea.vmem %s224, %s406
        %v408 = vld [vmem:[%s407] sm:$0xff]
        %v409 = vld [vmem:[%s407 + $0x8] sm:$0xff]
        %s410 = scalar_lea.vmem [#allocation2], 64
        %v411 = vld [vmem:[%s410] sm:$0xff]
        %v412 = vld [vmem:[%s410 + $0x8] sm:$0xff]
        %v413 = vld [vmem:[%s410 + $0x10] sm:$0xff]
        %v414 = vld [vmem:[%s410 + $0x18] sm:$0xff]
        %v416 = vsel %vm243, %v408, 0
        %v419 = vsel %vm243, %v409, 0
        %421 = vmatprep.subr.mxu0 0.0
        %422 = vmatpush1.msra.mxu0 0.0
        %423 = vmatprep.subr.mxu0 0.0
        %424 = vmatpush1.msra.mxu0 0.0
        %425 = vmatprep.subr.mxu0 0.0
        %426 = vmatpush1.msra.mxu0 0.0
        %427 = vmatprep.subr.mxu0 0.0
        %428 = vmatpush1.msra.mxu0 0.0
        %429 = vmatprep.subr.mxu0 0.0
        %430 = vmatpush1.msra.mxu0 0.0
        %431 = vmatprep.subr.mxu0 0.0
        %432 = vmatpush1.msra.mxu0 0.0
        %433 = vmatprep.subr.mxu0 0.0
        %434 = vmatpush1.msra.mxu0 0.0
        %435 = vmatprep.subr.mxu0 0.0
        %436 = vmatpush1.msra.mxu0 0.0
        %437 = vmatprep.subr.mxu0 0.0
        %438 = vmatpush1.msra.mxu0 0.0
        %439 = vmatprep.subr.mxu0 0.0
        %440 = vmatpush1.msra.mxu0 0.0
        %441 = vmatprep.subr.mxu0 0.0
        %442 = vmatpush1.msra.mxu0 0.0
        %443 = vmatprep.subr.mxu0 0.0
        %444 = vmatpush1.msra.mxu0 0.0
        %445 = vmatprep.subr.mxu0 0.0
        %446 = vmatpush1.msra.mxu0 %v414
        %447 = vmatprep.subr.mxu0 0.0
        %448 = vmatpush1.msra.mxu0 %v413
        %449 = vmatprep.subr.mxu0 0.0
        %450 = vmatpush1.msra.mxu0 %v412
        %451 = vmatprep.subr.mxu0 0.0
        %452 = vmatpush1.msra.mxu0 %v411
        %453 = vmatprep.subr.mxu0 0.0
        %454 = vmatpush2.msra.mxu0 0.0
        %455 = vmatprep.subr.mxu0 0.0
        %456 = vmatpush2.msra.mxu0 0.0
        %457 = vmatprep.subr.mxu0 0.0
        %458 = vmatpush2.msra.mxu0 0.0
        %459 = vmatprep.subr.mxu0 0.0
        %460 = vmatpush2.msra.mxu0 0.0
        %461 = vmatprep.subr.mxu0 0.0
        %462 = vmatpush2.msra.mxu0 0.0
        %463 = vmatprep.subr.mxu0 0.0
        %464 = vmatpush2.msra.mxu0 0.0
        %465 = vmatprep.subr.mxu0 0.0
        %466 = vmatpush2.msra.mxu0 0.0
        %467 = vmatprep.subr.mxu0 0.0
        %468 = vmatpush2.msra.mxu0 0.0
        %469 = vmatprep.subr.mxu0 0.0
        %470 = vmatpush2.msra.mxu0 0.0
        %471 = vmatprep.subr.mxu0 0.0
        %472 = vmatpush2.msra.mxu0 0.0
        %473 = vmatprep.subr.mxu0 0.0
        %474 = vmatpush2.msra.mxu0 0.0
        %475 = vmatprep.subr.mxu0 0.0
        %476 = vmatpush2.msra.mxu0 0.0
        %477 = vmatprep.subr.mxu0 0.0
        %478 = vmatpush2.msra.mxu0 0.0
        %479 = vmatprep.subr.mxu0 0.0
        %480 = vmatpush2.msra.mxu0 0.0
        %481 = vmatprep.subr.mxu0 0.0
        %482 = vmatpush2.msra.mxu0 0.0
        %483 = vmatprep.subr.mxu0 0.0
        %484 = vmatpush2.msra.mxu0 0.0
        %485 = vmatprep.mubr.f32.mxu0 0.0
        %486 = vmatmul.mubr.f32.gmra.mxu0 %v416
        %v487 = vpop.f32.mrf.mxu0
        %v488 = vadd.f32 0.0, %v487
        %v489 = vpop.f32.mrf.mxu0
        %490 = vmatprep.mubr.f32.mxu0 0.0
        %491 = vmatmul.mubr.f32.gmra.mxu0 %v419
        %v492 = vpop.f32.mrf.mxu0
        %v493 = vadd.f32 0.0, %v492
        %v494 = vpop.f32.mrf.mxu0
        %495 = vdwg.mxu0
        %v496 = vadd.f32 %v398, %v488
        %v497 = vadd.f32 %v403, %v493
        %v498 = vld [vmem:[%s2] sm:$0x1]
        %v500 = vlaneseq
        %v501 = vshrl.u32 %v500, 7
        %v502 = vsub.s32 0, %v501
        %v503 = vrot.slane %v498, %v502
        %v505 = vmul.f32 %v496, %v503
        %v506 = vmul.f32 %v497, %v503
        %v507 = vld [vmem:[%s3] sm:$0x1]
        %v509 = vlaneseq
        %v510 = vshrl.u32 %v509, 7
        %v511 = vsub.s32 0, %v510
        %v512 = vrot.slane %v507, %v511
        %v514 = vadd.f32 %v505, %v512
        %v515 = vadd.f32 %v506, %v512
        %v516 = vmax.f32 %v514, 0.0
        %v517 = vmax.f32 %v515, 0.0
        %518 = vst.msk [vmem:[%s219] sm:$0xff] %vm243, %v516
        %519 = vst.msk [vmem:[%s219 + $0x8] sm:$0xff] %vm243, %v517
        %s520 = sand.u32 %s130, 1
        %s521 = scalar_lea.sflag [#allocation4], %s520
        %s522 = sand.u32 %s130, 1
        %s523 = smul.addr %s522, 16
        %s524 = scalar_lea.vmem [#allocation5], %s523
        // Predicated region
        $region41: #{tpu_custom_call.1} parent=35 // pred_check
          %p525 = pneg %p140
        $region42: #{tpu_custom_call.1} parent=35 // pred_check_branch
          %527 = sbr.rel (%p525) target = $region44
        $region43: #{tpu_custom_call.1} parent=35 // pred_region
          %s528 = smul.u32 2, %s24
          %s530 = ssub.s32 256, 256
          %531 = vsyncadd %s521, %s530
          %s532 = smul.addr %s23, 2
          %s533 = sadd.s32 %s528, %s532
          %s534 = smul.addr %s533, 128
          %s535 = scalar_lea.hbm %s4, %s534
          %s536 = sshll.u32 %s524, 4
          %s537 = int_to_ptr.vmem [resolvable:$true] %s536
          %542 = dma.vmem_to_hbm [thread:$0]  %s537, 256, %s535, %s521, 128, 128, 8
        $region44: #{tpu_custom_call.1} parent=35 // pred_fallthru
          _
      $region36: #{tpu_custom_call.1} parent=5 // pred_fallthru
        _
      %p543 = scmp.le.s32.totalorder 2, %s14
      // Predicated region
      $region45: #{tpu_custom_call.1} parent=5 // pred_check
        %p544 = pneg %p543
      $region46: #{tpu_custom_call.1} parent=5 // pred_check_branch
        %546 = sbr.rel (%p544) target = $region48
      $region47: #{tpu_custom_call.1} parent=5 // pred_region
        %s547 = ssub.s32 %s14, 2
        // Predicated region
        $region49: #{tpu_custom_call.1} parent=47 // pred_check
          %p548 = pneg %p146
        $region50: #{tpu_custom_call.1} parent=47 // pred_check_branch
          %550 = sbr.rel (%p548) target = $region52
        $region51: #{tpu_custom_call.1} parent=47 // pred_region
          %s551 = sand.u32 %s131, 1
          %s552 = scalar_lea.sflag [#allocation4], %s551
          %s553 = sand.u32 %s131, 1
          %s554 = smul.addr %s553, 16
          %s555 = scalar_lea.vmem [#allocation5], %s554
          %556 = dma.done %s552, 256
        $region52: #{tpu_custom_call.1} parent=47 // pred_fallthru
          _
      $region48: #{tpu_custom_call.1} parent=5 // pred_fallthru
        _
    $region6: #{tpu_custom_call.1} parent=1 // loop_footer
      %s18 = sadd.s32 1, %s14
    $region7: #{tpu_custom_call.1} parent=1 // loop_footer_branch
      %13 = sbr.rel target = $region3
    $region8: #{tpu_custom_call.1} parent=1 // loop_exit
      _
    %557 = vsyncpa [#allocation3], 1
    %s558 = scalar_lea.sflag [#allocation3], 1
    %559 = vsyncpa %s558, 1
    %560 = vsyncpa [#allocation4], 1
    %s561 = scalar_lea.sflag [#allocation4], 1
    %562 = vsyncpa %s561, 1

</llo_original>
